<compile_context>
chip_gen: v5e
topology: v5e:2x2
jax: 0.10.0
libtpu: 0.0.40
codegen_flags: <defaults>
</compile_context>

<pallas_src>
import jax
import jax.numpy as jnp
from jax import lax
from jax.experimental import pallas as pl
from jax.experimental.pallas import tpu as pltpu


def _choose_band_rows(H, W, N, cap_cols=8192, min_grid_steps=4):
    """Pick output rows per band.

    Preferences (in order, with graceful fallback):
      * band_rows divides H               -> no output padding / slice copy
      * band_rows*W % 128 == 0 (or == HW) -> lane-dense, legal out BlockSpec
      * band_rows*W <= cap_cols           -> few-MB VMEM blocks (v7x-safe)
      * N * (H // band_rows) >= min_grid_steps -> pipelining + both TCs fed
    Returns the largest band satisfying the preferences.
    """
    divisors = [d for d in range(1, H + 1) if H % d == 0]
    legal = [d for d in divisors if (d * W) % 128 == 0 or d == H]
    capped = [d for d in legal if d * W <= cap_cols] or legal
    multi = [d for d in capped if N * (H // d) >= min_grid_steps]
    pool = multi or capped
    return max(pool)


def _make_stem_kernel(Cin, Cout, KH, KW, W, band_rows):
    THW = band_rows * W
    pad_w = (KW - 1) // 2

    def kernel(w_ref, x_ref, b_ref, o_ref, cols_ref):
        # w_ref:    (Cout, K)        BN-scaled conv weights, tap-major K
        # x_ref:    (1, 1, Cin, Wb)  row-band of the row-padded, flattened input
        # b_ref:    (Cout, 1)        folded BN bias (f32)
        # o_ref:    (1, Cout, THW)   output band (lane-dense)
        # cols_ref: (K, THW)         VMEM scratch: in-kernel im2col slab
        #
        # Width-edge mask: the flattened layout wraps row ends, so taps with a
        # horizontal offset pick up the neighbouring row's pixels at c==0 /
        # c==W-1; those columns are zeroed (== the conv's zero padding).
        col = lax.broadcasted_iota(jnp.int32, (Cin, THW), 1) % W
        for kh in range(KH):
            for kw in range(KW):
                t = kh * KW + kw
                off = kh * W + kw                       # static in-band offset
                patch = x_ref[0, 0, :, off:off + THW]   # (Cin, THW), static slice
                dc = kw - pad_w
                if dc < 0:
                    patch = jnp.where(col >= -dc, patch, jnp.zeros_like(patch))
                elif dc > 0:
                    patch = jnp.where(col < W - dc, patch, jnp.zeros_like(patch))
                cols_ref[t * Cin:(t + 1) * Cin, :] = patch
        # Single MXU matmul for the whole band; f32 accumulate + f32 epilogue.
        acc = jnp.dot(w_ref[...], cols_ref[...],
                      preferred_element_type=jnp.float32)
        y = jnp.maximum(acc + b_ref[...], 0.0)
        o_ref[0] = y.astype(o_ref.dtype)

    return kernel


def stem_forward(x_nchw, w_oihw, gamma, beta, running_mean, running_var,
                 eps=0.01, compute_dtype=jnp.bfloat16, out_dtype=None,
                 cap_cols=8192):
    """Conv(KxK, stride 1, pad (K-1)//2, no bias) -> BN(eval, eps) -> ReLU.

    NCHW in / NCHW out. `out_dtype=None` keeps the input dtype; pass
    jnp.bfloat16 to halve the (dominant) output HBM stream.
    """
    N, Cin, H, W = x_nchw.shape
    Cout, Cin_w, KH, KW = w_oihw.shape
    assert Cin_w == Cin
    assert KH % 2 == 1 and KW % 2 == 1, "odd kernel only"
    if out_dtype is None:
        out_dtype = x_nchw.dtype
    pad_h, pad_w = (KH - 1) // 2, (KW - 1) // 2
    HW = H * W
    K = Cin * KH * KW

    # ---- fold BN (inference stats) into conv weights + a bias vector ----
    scale = gamma / jnp.sqrt(running_var + eps)
    bias = (beta - running_mean * scale).astype(jnp.float32).reshape(Cout, 1)
    # tap-major K ordering: K index = (kh*KW + kw)*Cin + cin  (matches the
    # order the kernel fills the cols scratch).
    w_flat = (jnp.transpose(w_oihw, (0, 2, 3, 1)).reshape(Cout, K)
              * scale[:, None]).astype(compute_dtype)

    # ---- band tiling over output rows ----
    band_rows = _choose_band_rows(H, W, N, cap_cols=cap_cols)
    n_bands = H // band_rows
    THW = band_rows * W
    Wb = THW + (KH - 1) * W + (KW - 1)          # band + halo window

    # ---- light input prep (NO 9x im2col in HBM) ----
    # Row-pad, flatten rows (metadata-only for NCHW), add pad_w flat elements
    # at each end so every tap window stays in range, then cut overlapping
    # band windows (halo duplication only ~ (KH-1)/band_rows of the input).
    xq = x_nchw.astype(compute_dtype)
    xp = jnp.pad(xq, ((0, 0), (0, 0), (pad_h, pad_h), (0, 0)))
    xflat = xp.reshape(N, Cin, (H + 2 * pad_h) * W)
    xflat = jnp.pad(xflat, ((0, 0), (0, 0), (pad_w, pad_w)))
    xb = jnp.stack([xflat[:, :, s * THW:s * THW + Wb] for s in range(n_bands)],
                   axis=1)                       # (N, n_bands, Cin, Wb)

    kernel = _make_stem_kernel(Cin, Cout, KH, KW, W, band_rows)

    c_item = jnp.dtype(compute_dtype).itemsize
    o_item = jnp.dtype(out_dtype).itemsize
    cost = pl.CostEstimate(
        flops=2 * N * Cout * K * HW,
        transcendentals=0,
        bytes_accessed=(N * n_bands * Cin * Wb * c_item
                        + Cout * K * c_item + Cout * 4
                        + N * Cout * HW * o_item))

    out = pl.pallas_call(
        kernel,
        out_shape=jax.ShapeDtypeStruct((N, Cout, HW), out_dtype),
        grid=(N, n_bands),
        in_specs=[
            pl.BlockSpec((Cout, K), lambda b, s: (0, 0)),              # weights
            pl.BlockSpec((1, 1, Cin, Wb), lambda b, s: (b, s, 0, 0)),  # input band
            pl.BlockSpec((Cout, 1), lambda b, s: (0, 0)),              # BN bias
        ],
        out_specs=pl.BlockSpec((1, Cout, THW), lambda b, s: (b, 0, s)),
        scratch_shapes=[pltpu.VMEM((K, THW), compute_dtype)],
        compiler_params=pltpu.CompilerParams(
            dimension_semantics=("parallel", "parallel")),
        cost_estimate=cost,
    )(w_flat, xb, bias)

    # band_rows divides H, so there is nothing to strip: this reshape is
    # metadata-only (no transpose, no copy).
    return out.reshape(N, Cout, H, W)


def reference_forward(x_nchw, w_oihw, gamma, beta, running_mean, running_var,
                      eps=0.01):
    pad = (w_oihw.shape[2] - 1) // 2
    y = lax.conv_general_dilated(
        x_nchw, w_oihw, window_strides=(1, 1),
        padding=[(pad, pad), (pad, pad)],
        dimension_numbers=("NCHW", "OIHW", "NCHW"))
    scale = gamma / jnp.sqrt(running_var + eps)
    bias = beta - running_mean * scale
    y = y * scale[None, :, None, None] + bias[None, :, None, None]
    return jnp.maximum(y, 0.0)


if __name__ == "__main__":
    key = jax.random.PRNGKey(0)
    k_x, k_w, k_g, k_b, k_m, k_v = jax.random.split(key, 6)

    # Small shapes: batch=2, in_channels=4, spatial=16x16, out_channels=32.
    N, Cin, H, W = 2, 4, 16, 16
    Cout, Kk = 32, 3

    x = jax.random.normal(k_x, (N, Cin, H, W), jnp.float32)
    w = jax.random.normal(k_w, (Cout, Cin, Kk, Kk), jnp.float32) * 0.1
    gamma = 1.0 + 0.1 * jax.random.normal(k_g, (Cout,), jnp.float32)
    beta = 0.1 * jax.random.normal(k_b, (Cout,), jnp.float32)
    running_mean = 0.05 * jax.random.normal(k_m, (Cout,), jnp.float32)
    running_var = jnp.abs(1.0 + 0.1 * jax.random.normal(k_v, (Cout,),
                                                        jnp.float32))

    ref = reference_forward(x, w, gamma, beta, running_mean, running_var)

    # Deployment path: bf16 operands AND bf16 output (halves the dominant
    # output HBM stream); f32 accumulate + epilogue inside the kernel.
    out_bf16 = stem_forward(x, w, gamma, beta, running_mean, running_var,
                            compute_dtype=jnp.bfloat16, out_dtype=jnp.bfloat16)
    out_bf16 = jax.block_until_ready(out_bf16)
    assert out_bf16.shape == (N, Cout, H, W)
    assert out_bf16.dtype == jnp.bfloat16
    err_bf16 = float(jnp.max(jnp.abs(out_bf16.astype(jnp.float32) - ref)))
    assert jnp.allclose(out_bf16.astype(jnp.float32), ref,
                        rtol=3e-2, atol=3e-2), err_bf16

    # f32 path: tight numerical check of the kernel structure itself.
    out_f32 = stem_forward(x, w, gamma, beta, running_mean, running_var,
                           compute_dtype=jnp.float32, out_dtype=jnp.float32)
    out_f32 = jax.block_until_ready(out_f32)
    assert out_f32.shape == (N, Cout, H, W)
    err_f32 = float(jnp.max(jnp.abs(out_f32 - ref)))
    assert jnp.allclose(out_f32, ref, rtol=1e-4, atol=1e-4), err_f32

    print("KERNEL_OK")
</pallas_src>

<mosaic_0001>
module attributes {stable_mosaic.version = 11 : i64} {
  func.func @kernel(%arg0: i32, %arg1: i32, %arg2: memref<32x36xbf16, #tpu.memory_space<vmem>>, %arg3: memref<1x1x4x162xbf16, #tpu.memory_space<vmem>>, %arg4: memref<32x1xf32, #tpu.memory_space<vmem>>, %arg5: memref<1x32x128xbf16, #tpu.memory_space<vmem>>, %arg6: memref<36x128xbf16, #tpu.memory_space<vmem>>) attributes {dimension_semantics = [#tpu.dimension_semantics<parallel>, #tpu.dimension_semantics<parallel>], iteration_bounds = array<i64: 2, 2>, scalar_prefetch = 0 : i64, scratch_operands = 1 : i64, tpu.core_type = #tpu.core_type<tc>, window_params = [{pipeline_mode = #tpu.pipeline_mode<synchronous>, transform_indices = @transform_0, window_bounds = array<i64: 32, 36>}, {transform_indices = @transform_1, window_bounds = array<i64: 1, 1, 4, 162>}, {pipeline_mode = #tpu.pipeline_mode<synchronous>, transform_indices = @transform_2, window_bounds = array<i64: 32, 1>}, {transform_indices = @transform_3, window_bounds = array<i64: 1, 32, 128>}]} {
    %0 = tpu.iota {dimensions = array<i32: 1>} : vector<4x128xi32>
    %c16_i32 = arith.constant 16 : i32
    %c0_i32 = arith.constant 0 : i32
    %1 = arith.cmpi eq, %c16_i32, %c0_i32 : i32
    %c1_i32 = arith.constant 1 : i32
    %2 = arith.select %1, %c1_i32, %c16_i32 : i32
    %3 = vector.broadcast %2 : i32 to vector<4x128xi32>
    %4 = arith.remsi %0, %3 : vector<4x128xi32>
    %c0_i32_0 = arith.constant 0 : i32
    %5 = vector.broadcast %c0_i32_0 : i32 to vector<4x128xi32>
    %6 = arith.cmpi ne, %4, %5 : vector<4x128xi32>
    %c0_i32_1 = arith.constant 0 : i32
    %7 = vector.broadcast %c0_i32_1 : i32 to vector<4x128xi32>
    %8 = arith.cmpi slt, %4, %7 : vector<4x128xi32>
    %c0_i32_2 = arith.constant 0 : i32
    %9 = arith.cmpi slt, %2, %c0_i32_2 : i32
    %10 = vector.broadcast %9 : i1 to vector<4x128xi1>
    %11 = vector.broadcast %10 : vector<4x128xi1> to vector<4x128xi1>
    %12 = arith.xori %8, %11 : vector<4x128xi1>
    %13 = arith.andi %12, %6 : vector<4x128xi1>
    %14 = vector.broadcast %2 : i32 to vector<4x128xi32>
    %15 = arith.addi %4, %14 : vector<4x128xi32>
    %16 = arith.select %13, %15, %4 : vector<4x128xi1>, vector<4x128xi32>
    %c0 = arith.constant 0 : index
    %c0_3 = arith.constant 0 : index
    %c0_4 = arith.constant 0 : index
    %c0_5 = arith.constant 0 : index
    %17 = vector.load %arg3[%c0, %c0_3, %c0_4, %c0_5] : memref<1x1x4x162xbf16, #tpu.memory_space<vmem>>, vector<1x1x4x128xbf16>
    %18 = vector.shape_cast %17 : vector<1x1x4x128xbf16> to vector<4x128xbf16>
    %c1_i32_6 = arith.constant 1 : i32
    %19 = vector.broadcast %c1_i32_6 : i32 to vector<4x128xi32>
    %20 = arith.cmpi sge, %16, %19 : vector<4x128xi32>
    %cst = arith.constant 0.000000e+00 : bf16
    %21 = vector.broadcast %cst : bf16 to vector<4x128xbf16>
    %22 = arith.select %20, %18, %21 : vector<4x128xi1>, vector<4x128xbf16>
    %c0_7 = arith.constant 0 : index
    %c0_8 = arith.constant 0 : index
    %23 = vector.load %arg6[%c0_7, %c0_8] : memref<36x128xbf16, #tpu.memory_space<vmem>>, vector<4x128xbf16>
    tpu.vector_store %arg6[%c0_7, %c0_8], %22 {strides = array<i32>} : memref<36x128xbf16, #tpu.memory_space<vmem>>, vector<4x128xbf16>,
    %c0_9 = arith.constant 0 : index
    %c0_10 = arith.constant 0 : index
    %c0_11 = arith.constant 0 : index
    %c1 = arith.constant 1 : index
    %24 = vector.load %arg3[%c0_9, %c0_10, %c0_11, %c1] : memref<1x1x4x162xbf16, #tpu.memory_space<vmem>>, vector<1x1x4x128xbf16>
    %25 = vector.shape_cast %24 : vector<1x1x4x128xbf16> to vector<4x128xbf16>
    %c4 = arith.constant 4 : index
    %c0_12 = arith.constant 0 : index
    %26 = vector.load %arg6[%c4, %c0_12] : memref<36x128xbf16, #tpu.memory_space<vmem>>, vector<4x128xbf16>
    tpu.vector_store %arg6[%c4, %c0_12], %25 {strides = array<i32>} : memref<36x128xbf16, #tpu.memory_space<vmem>>, vector<4x128xbf16>,
    %c0_13 = arith.constant 0 : index
    %c0_14 = arith.constant 0 : index
    %c0_15 = arith.constant 0 : index
    %c2 = arith.constant 2 : index
    %27 = vector.load %arg3[%c0_13, %c0_14, %c0_15, %c2] : memref<1x1x4x162xbf16, #tpu.memory_space<vmem>>, vector<1x1x4x128xbf16>
    %28 = vector.shape_cast %27 : vector<1x1x4x128xbf16> to vector<4x128xbf16>
    %c15_i32 = arith.constant 15 : i32
    %29 = vector.broadcast %c15_i32 : i32 to vector<4x128xi32>
    %30 = arith.cmpi slt, %16, %29 : vector<4x128xi32>
    %cst_16 = arith.constant 0.000000e+00 : bf16
    %31 = vector.broadcast %cst_16 : bf16 to vector<4x128xbf16>
    %32 = arith.select %30, %28, %31 : vector<4x128xi1>, vector<4x128xbf16>
    %c8 = arith.constant 8 : index
    %c0_17 = arith.constant 0 : index
    %33 = vector.load %arg6[%c8, %c0_17] : memref<36x128xbf16, #tpu.memory_space<vmem>>, vector<4x128xbf16>
    tpu.vector_store %arg6[%c8, %c0_17], %32 {strides = array<i32>} : memref<36x128xbf16, #tpu.memory_space<vmem>>, vector<4x128xbf16>,
    %c0_18 = arith.constant 0 : index
    %c0_19 = arith.constant 0 : index
    %c0_20 = arith.constant 0 : index
    %c16 = arith.constant 16 : index
    %34 = vector.load %arg3[%c0_18, %c0_19, %c0_20, %c16] : memref<1x1x4x162xbf16, #tpu.memory_space<vmem>>, vector<1x1x4x128xbf16>
    %35 = vector.shape_cast %34 : vector<1x1x4x128xbf16> to vector<4x128xbf16>
    %c1_i32_21 = arith.constant 1 : i32
    %36 = vector.broadcast %c1_i32_21 : i32 to vector<4x128xi32>
    %37 = arith.cmpi sge, %16, %36 : vector<4x128xi32>
    %cst_22 = arith.constant 0.000000e+00 : bf16
    %38 = vector.broadcast %cst_22 : bf16 to vector<4x128xbf16>
    %39 = arith.select %37, %35, %38 : vector<4x128xi1>, vector<4x128xbf16>
    %c12 = arith.constant 12 : index
    %c0_23 = arith.constant 0 : index
    %40 = vector.load %arg6[%c12, %c0_23] : memref<36x128xbf16, #tpu.memory_space<vmem>>, vector<4x128xbf16>
    tpu.vector_store %arg6[%c12, %c0_23], %39 {strides = array<i32>} : memref<36x128xbf16, #tpu.memory_space<vmem>>, vector<4x128xbf16>,
    %c0_24 = arith.constant 0 : index
    %c0_25 = arith.constant 0 : index
    %c0_26 = arith.constant 0 : index
    %c17 = arith.constant 17 : index
    %41 = vector.load %arg3[%c0_24, %c0_25, %c0_26, %c17] : memref<1x1x4x162xbf16, #tpu.memory_space<vmem>>, vector<1x1x4x128xbf16>
    %42 = vector.shape_cast %41 : vector<1x1x4x128xbf16> to vector<4x128xbf16>
    %c16_27 = arith.constant 16 : index
    %c0_28 = arith.constant 0 : index
    %43 = vector.load %arg6[%c16_27, %c0_28] : memref<36x128xbf16, #tpu.memory_space<vmem>>, vector<4x128xbf16>
    tpu.vector_store %arg6[%c16_27, %c0_28], %42 {strides = array<i32>} : memref<36x128xbf16, #tpu.memory_space<vmem>>, vector<4x128xbf16>,
    %c0_29 = arith.constant 0 : index
    %c0_30 = arith.constant 0 : index
    %c0_31 = arith.constant 0 : index
    %c18 = arith.constant 18 : index
    %44 = vector.load %arg3[%c0_29, %c0_30, %c0_31, %c18] : memref<1x1x4x162xbf16, #tpu.memory_space<vmem>>, vector<1x1x4x128xbf16>
    %45 = vector.shape_cast %44 : vector<1x1x4x128xbf16> to vector<4x128xbf16>
    %c15_i32_32 = arith.constant 15 : i32
    %46 = vector.broadcast %c15_i32_32 : i32 to vector<4x128xi32>
    %47 = arith.cmpi slt, %16, %46 : vector<4x128xi32>
    %cst_33 = arith.constant 0.000000e+00 : bf16
    %48 = vector.broadcast %cst_33 : bf16 to vector<4x128xbf16>
    %49 = arith.select %47, %45, %48 : vector<4x128xi1>, vector<4x128xbf16>
    %c20 = arith.constant 20 : index
    %c0_34 = arith.constant 0 : index
    %50 = vector.load %arg6[%c20, %c0_34] : memref<36x128xbf16, #tpu.memory_space<vmem>>, vector<4x128xbf16>
    tpu.vector_store %arg6[%c20, %c0_34], %49 {strides = array<i32>} : memref<36x128xbf16, #tpu.memory_space<vmem>>, vector<4x128xbf16>,
    %c0_35 = arith.constant 0 : index
    %c0_36 = arith.constant 0 : index
    %c0_37 = arith.constant 0 : index
    %c32 = arith.constant 32 : index
    %51 = vector.load %arg3[%c0_35, %c0_36, %c0_37, %c32] : memref<1x1x4x162xbf16, #tpu.memory_space<vmem>>, vector<1x1x4x128xbf16>
    %52 = vector.shape_cast %51 : vector<1x1x4x128xbf16> to vector<4x128xbf16>
    %c1_i32_38 = arith.constant 1 : i32
    %53 = vector.broadcast %c1_i32_38 : i32 to vector<4x128xi32>
    %54 = arith.cmpi sge, %16, %53 : vector<4x128xi32>
    %cst_39 = arith.constant 0.000000e+00 : bf16
    %55 = vector.broadcast %cst_39 : bf16 to vector<4x128xbf16>
    %56 = arith.select %54, %52, %55 : vector<4x128xi1>, vector<4x128xbf16>
    %c24 = arith.constant 24 : index
    %c0_40 = arith.constant 0 : index
    %57 = vector.load %arg6[%c24, %c0_40] : memref<36x128xbf16, #tpu.memory_space<vmem>>, vector<4x128xbf16>
    tpu.vector_store %arg6[%c24, %c0_40], %56 {strides = array<i32>} : memref<36x128xbf16, #tpu.memory_space<vmem>>, vector<4x128xbf16>,
    %c0_41 = arith.constant 0 : index
    %c0_42 = arith.constant 0 : index
    %c0_43 = arith.constant 0 : index
    %c33 = arith.constant 33 : index
    %58 = vector.load %arg3[%c0_41, %c0_42, %c0_43, %c33] : memref<1x1x4x162xbf16, #tpu.memory_space<vmem>>, vector<1x1x4x128xbf16>
    %59 = vector.shape_cast %58 : vector<1x1x4x128xbf16> to vector<4x128xbf16>
    %c28 = arith.constant 28 : index
    %c0_44 = arith.constant 0 : index
    %60 = vector.load %arg6[%c28, %c0_44] : memref<36x128xbf16, #tpu.memory_space<vmem>>, vector<4x128xbf16>
    tpu.vector_store %arg6[%c28, %c0_44], %59 {strides = array<i32>} : memref<36x128xbf16, #tpu.memory_space<vmem>>, vector<4x128xbf16>,
    %c0_45 = arith.constant 0 : index
    %c0_46 = arith.constant 0 : index
    %c0_47 = arith.constant 0 : index
    %c34 = arith.constant 34 : index
    %61 = vector.load %arg3[%c0_45, %c0_46, %c0_47, %c34] : memref<1x1x4x162xbf16, #tpu.memory_space<vmem>>, vector<1x1x4x128xbf16>
    %62 = vector.shape_cast %61 : vector<1x1x4x128xbf16> to vector<4x128xbf16>
    %c15_i32_48 = arith.constant 15 : i32
    %63 = vector.broadcast %c15_i32_48 : i32 to vector<4x128xi32>
    %64 = arith.cmpi slt, %16, %63 : vector<4x128xi32>
    %cst_49 = arith.constant 0.000000e+00 : bf16
    %65 = vector.broadcast %cst_49 : bf16 to vector<4x128xbf16>
    %66 = arith.select %64, %62, %65 : vector<4x128xi1>, vector<4x128xbf16>
    %c32_50 = arith.constant 32 : index
    %c0_51 = arith.constant 0 : index
    %67 = vector.load %arg6[%c32_50, %c0_51] : memref<36x128xbf16, #tpu.memory_space<vmem>>, vector<4x128xbf16>
    tpu.vector_store %arg6[%c32_50, %c0_51], %66 {strides = array<i32>} : memref<36x128xbf16, #tpu.memory_space<vmem>>, vector<4x128xbf16>,
    %c0_52 = arith.constant 0 : index
    %c0_53 = arith.constant 0 : index
    %68 = vector.load %arg2[%c0_52, %c0_53] : memref<32x36xbf16, #tpu.memory_space<vmem>>, vector<32x36xbf16>
    %c0_54 = arith.constant 0 : index
    %c0_55 = arith.constant 0 : index
    %69 = vector.load %arg6[%c0_54, %c0_55] : memref<36x128xbf16, #tpu.memory_space<vmem>>, vector<36x128xbf16>
    %cst_56 = arith.constant dense<0.000000e+00> : vector<32x128xf32>
    %70 = tpu.matmul %68, %69, %cst_56 {dimension_numbers = #tpu.dot_dimension_numbers<[1], [0], [0], [1], [0, 0, 1, 1], [], []>} : vector<32x36xbf16>, vector<36x128xbf16>, vector<32x128xf32> -> vector<32x128xf32>
    %c0_57 = arith.constant 0 : index
    %c0_58 = arith.constant 0 : index
    %71 = vector.load %arg4[%c0_57, %c0_58] : memref<32x1xf32, #tpu.memory_space<vmem>>, vector<32x1xf32>
    %72 = vector.broadcast %71 : vector<32x1xf32> to vector<32x128xf32>
    %73 = arith.addf %70, %72 : vector<32x128xf32>
    %cst_59 = arith.constant 0.000000e+00 : f32
    %74 = vector.broadcast %cst_59 : f32 to vector<32x128xf32>
    %75 = arith.maximumf %73, %74 : vector<32x128xf32>
    %76 = arith.truncf %75 : vector<32x128xf32> to vector<32x128xbf16>
    %c0_60 = arith.constant 0 : index
    %c0_61 = arith.constant 0 : index
    %c0_62 = arith.constant 0 : index
    %77 = vector.load %arg5[%c0_60, %c0_61, %c0_62] : memref<1x32x128xbf16, #tpu.memory_space<vmem>>, vector<1x32x128xbf16>
    %78 = vector.shape_cast %77 : vector<1x32x128xbf16> to vector<32x128xbf16>
    %79 = vector.shape_cast %76 : vector<32x128xbf16> to vector<1x32x128xbf16>
    tpu.vector_store %arg5[%c0_60, %c0_61, %c0_62], %79 {strides = array<i32>} : memref<1x32x128xbf16, #tpu.memory_space<vmem>>, vector<1x32x128xbf16>,
    return
  }
  func.func @transform_0(%arg0: i32, %arg1: i32) -> (i32, i32) {
    %c0_i32 = arith.constant 0 : i32
    %c0_i32_0 = arith.constant 0 : i32
    %c0_i32_1 = arith.constant 0 : i32
    return %c0_i32, %c0_i32_0 : i32, i32
  }
  func.func @transform_1(%arg0: i32, %arg1: i32) -> (i32, i32, i32, i32) {
    %c0_i32 = arith.constant 0 : i32
    %c0_i32_0 = arith.constant 0 : i32
    %c0_i32_1 = arith.constant 0 : i32
    return %arg0, %arg1, %c0_i32, %c0_i32_0 : i32, i32, i32, i32
  }
  func.func @transform_2(%arg0: i32, %arg1: i32) -> (i32, i32) {
    %c0_i32 = arith.constant 0 : i32
    %c0_i32_0 = arith.constant 0 : i32
    %c0_i32_1 = arith.constant 0 : i32
    return %c0_i32, %c0_i32_0 : i32, i32
  }
  func.func @transform_3(%arg0: i32, %arg1: i32) -> (i32, i32, i32) {
    %c0_i32 = arith.constant 0 : i32
    %c0_i32_0 = arith.constant 0 : i32
    return %arg0, %c0_i32, %arg1 : i32, i32, i32
  }
}

</mosaic_0001>

<llo_original>
// kernel: tpu_custom_call.1
$region0: #{tpu_custom_call.1}
  #allocation0 [shape = 'u32[]', space=smem, size = 0x4, offset = 0x4, fixed_abs, tag = 'smem constant byte address 0x4 - core index']
  #allocation1 [shape = 'u32[72,128]{1,0:T(1,128)}', space=vmem, size = 0x9000, scoped, tag = 'internal scratch']
  #allocation2 [shape = 'bf16[36,128]{1,0:T(8,128)(2,1)}', space=vmem, size = 0x2800, scoped, tag = 'scratch operand']
  %s0 = inlined_call_operand.vmem [shape: bf16[32,36], index: 0, kind: input, shape index: {}]
  %s1 = inlined_call_operand.vmem [shape: bf16[2,2,4,162], index: 1, kind: input, shape index: {}]
  %s2 = inlined_call_operand.vmem [shape: f32[32,1], index: 2, kind: input, shape index: {}]
  %s3 = inlined_call_operand.hbm [shape: bf16[2,32,256], index: 3, kind: output, shape index: {}]
  %s4 = sld [smem:[#allocation0]]
  $region45: #{tpu_custom_call.1} parent=0
    _
  %s6 = ssub.s32 1, %s4
  %s7 = scalar_select 0, %s6, %s4
  $region1: #{tpu_custom_call.1} parent=0
    #allocation3 [shape = 'u8[16384]{0}', space=vmem, size = 0x4000, scoped, tag = 'output window, operand 0']
    #allocation4 [shape = 's32[2]{0}', space=sflag, size = 0x8, scoped, tag = 'scoped memory for tpu_custom_call.1']
    %8 = vsyncpa [#allocation4], 0
    %s9 = scalar_lea.sflag [#allocation4], 1
    %10 = vsyncpa %s9, 0
    loop: start=0, step=1, limit=6
    $region2: #{tpu_custom_call.1} parent=1 // loop_pre_header
      _
    $region3: #{tpu_custom_call.1} parent=1 // loop_header
      %s12 = sphi 0, %s16
      %p13 = scmp.ge.s32.totalorder %s12, 6
      %s19 = sphi 0, %s31
      %s20 = sphi 0, %s27
      %s21 = sphi 0, %s19
      %s22 = sphi 0, %s20
      %s23 = sphi 0, %s21
      %s24 = sphi 0, %s22
      %s32 = sphi 0, %s32
      %s34 = sphi 0, %s32
      %s35 = sphi 0, %s34
      %s49 = sphi 0, %s35
      %s57 = sphi 0, %s59
      %s60 = sphi 0, %s57
      %s61 = sphi 0, %s60
      %s77 = sphi 0, %s61
      %s81 = sphi 0, %s81
      %s83 = sphi 0, %s81
      %s84 = sphi 0, %s83
      %s98 = sphi 0, %s84
      %s106 = sphi 0, %s108
      %s109 = sphi 0, %s106
      %s110 = sphi 0, %s109
      %s126 = sphi 0, %s110
    $region4: #{tpu_custom_call.1} parent=1 // loop_header_branch
      %15 = sbr.rel (%p13) target = $region8
    $region5: #{tpu_custom_call.1} parent=1 // loop_body
      %s17 = ssub.s32 %s12, 1
      %s18 = ssub.s32 %s12, 2
      %s25 = sadd.s32 1, %s20
      %p26 = scmp.ge.s32.totalorder %s25, 2
      %s27 = scalar_select %p26, 0, %s25
      %s28 = sadd.s32 1, %s19
      %s29 = scalar_select %p26, %s28, %s19
      %p30 = scmp.ge.s32.totalorder %s29, 2
      %s31 = scalar_select %p30, 0, %s29
      %s33 = sadd.s32 %s32, 1
      %p36 = scmp.eq.s32.totalorder %s12, 3
      %p37 = scmp.ne.s32.totalorder %s32, %s34
      %p38 = scmp.eq.s32.totalorder %s12, 0
      %p39 = por %p37, %p38
      %p40 = scmp.ne.s32.totalorder %s32, %s34
      %p41 = scmp.eq.s32.totalorder %s17, 3
      %p42 = por %p40, %p41
      %p43 = scmp.ne.s32.totalorder %s34, %s35
      %p44 = scmp.eq.s32.totalorder %s17, 0
      %p45 = por %p43, %p44
      %p46 = scmp.ne.s32.totalorder %s34, %s35
      %p47 = scmp.eq.s32.totalorder %s18, 3
      %p48 = por %p46, %p47
      %p50 = scmp.ne.s32.totalorder %s35, %s49
      %p51 = scmp.eq.s32.totalorder %s18, 0
      %p52 = por %p50, %p51
      %s53 = ssub.s32 %s19, %s31
      %s54 = ssub.s32 %s20, %s27
      %s55 = sor.u32 %s53, %s54
      %p56 = scmp.eq.s32.totalorder %s55, 0
      %s58 = sadd.s32 %s57, 1
      %s59 = scalar_select %p56, %s57, %s58
      %p62 = pneg %p56
      %p63 = scmp.eq.s32.totalorder %s12, 3
      %p64 = por %p62, %p63
      %p65 = scmp.ne.s32.totalorder %s57, %s60
      %p66 = scmp.eq.s32.totalorder %s12, 0
      %p67 = por %p65, %p66
      %p68 = scmp.ne.s32.totalorder %s57, %s60
      %p69 = scmp.eq.s32.totalorder %s17, 3
      %p70 = por %p68, %p69
      %p71 = scmp.ne.s32.totalorder %s60, %s61
      %p72 = scmp.eq.s32.totalorder %s17, 0
      %p73 = por %p71, %p72
      %p74 = scmp.ne.s32.totalorder %s60, %s61
      %p75 = scmp.eq.s32.totalorder %s18, 3
      %p76 = por %p74, %p75
      %p78 = scmp.ne.s32.totalorder %s61, %s77
      %p79 = scmp.eq.s32.totalorder %s18, 0
      %p80 = por %p78, %p79
      %s82 = sadd.s32 %s81, 1
      %p85 = scmp.eq.s32.totalorder %s12, 3
      %p86 = scmp.ne.s32.totalorder %s81, %s83
      %p87 = scmp.eq.s32.totalorder %s12, 0
      %p88 = por %p86, %p87
      %p89 = scmp.ne.s32.totalorder %s81, %s83
      %p90 = scmp.eq.s32.totalorder %s17, 3
      %p91 = por %p89, %p90
      %p92 = scmp.ne.s32.totalorder %s83, %s84
      %p93 = scmp.eq.s32.totalorder %s17, 0
      %p94 = por %p92, %p93
      %p95 = scmp.ne.s32.totalorder %s83, %s84
      %p96 = scmp.eq.s32.totalorder %s18, 3
      %p97 = por %p95, %p96
      %p99 = scmp.ne.s32.totalorder %s84, %s98
      %p100 = scmp.eq.s32.totalorder %s18, 0
      %p101 = por %p99, %p100
      %s102 = ssub.s32 %s19, %s31
      %s103 = ssub.s32 %s20, %s27
      %s104 = sor.u32 %s102, %s103
      %p105 = scmp.eq.s32.totalorder %s104, 0
      %s107 = sadd.s32 %s106, 1
      %s108 = scalar_select %p105, %s106, %s107
      %p111 = pneg %p105
      %p112 = scmp.eq.s32.totalorder %s12, 3
      %p113 = por %p111, %p112
      %p114 = scmp.ne.s32.totalorder %s106, %s109
      %p115 = scmp.eq.s32.totalorder %s12, 0
      %p116 = por %p114, %p115
      %p117 = scmp.ne.s32.totalorder %s106, %s109
      %p118 = scmp.eq.s32.totalorder %s17, 3
      %p119 = por %p117, %p118
      %p120 = scmp.ne.s32.totalorder %s109, %s110
      %p121 = scmp.eq.s32.totalorder %s17, 0
      %p122 = por %p120, %p121
      %p123 = scmp.ne.s32.totalorder %s109, %s110
      %p124 = scmp.eq.s32.totalorder %s18, 3
      %p125 = por %p123, %p124
      %p127 = scmp.ne.s32.totalorder %s110, %s126
      %p128 = scmp.eq.s32.totalorder %s18, 0
      %p129 = por %p127, %p128
      %p130 = scmp.le.s32.totalorder 1, %s12
      %p131 = scmp.lt.s32.totalorder %s12, 5
      %p132 = pnand %p130, %p131
      %p133 = pneg %p132
      // Predicated region
      $region9: #{tpu_custom_call.1} parent=5 // pred_check
        _
      $region10: #{tpu_custom_call.1} parent=5 // pred_check_branch
        %135 = sbr.rel (%p132) target = $region12
      $region11: #{tpu_custom_call.1} parent=5 // pred_region
        %s136 = ssub.s32 %s12, 1
        // Predicated region
        $region13: #{tpu_custom_call.1} parent=11 // pred_check
          %p137 = pneg %p45
        $region14: #{tpu_custom_call.1} parent=11 // pred_check_branch
          %139 = sbr.rel (%p137) target = $region16
        $region15: #{tpu_custom_call.1} parent=11 // pred_region
          _
        $region16: #{tpu_custom_call.1} parent=11 // pred_fallthru
          _
        // Predicated region
        $region17: #{tpu_custom_call.1} parent=11 // pred_check
          %p140 = pneg %p94
        $region18: #{tpu_custom_call.1} parent=11 // pred_check_branch
          %142 = sbr.rel (%p140) target = $region20
        $region19: #{tpu_custom_call.1} parent=11 // pred_region
          _
        $region20: #{tpu_custom_call.1} parent=11 // pred_fallthru
          _
      $region12: #{tpu_custom_call.1} parent=5 // pred_fallthru
        _
      %p143 = scmp.lt.s32.totalorder %s12, 4
      // Predicated region
      $region21: #{tpu_custom_call.1} parent=5 // pred_check
        %p144 = pneg %p143
      $region22: #{tpu_custom_call.1} parent=5 // pred_check_branch
        %146 = sbr.rel (%p144) target = $region24
      $region23: #{tpu_custom_call.1} parent=5 // pred_region
        // Predicated region
        $region25: #{tpu_custom_call.1} parent=23 // pred_check
          %p147 = pneg %p67
        $region26: #{tpu_custom_call.1} parent=23 // pred_check_branch
          %149 = sbr.rel (%p147) target = $region28
        $region27: #{tpu_custom_call.1} parent=23 // pred_region
          %p150 = scmp.lt.s32.totalorder %s19, 1
          %s151 = scalar_select %p150, %s19, 1
          %p152 = scmp.lt.s32.totalorder %s20, 1
          %s153 = scalar_select %p152, %s20, 1
          %s154 = smul.addr %s153, 2
          %s155 = smul.addr %s151, 4
          %s156 = sadd.s32 %s154, %s155
          %s157 = smul.addr %s156, 2
          %s158 = scalar_lea.vmem %s1, %s157
        $region28: #{tpu_custom_call.1} parent=23 // pred_fallthru
          _
      $region24: #{tpu_custom_call.1} parent=5 // pred_fallthru
        _
      %p159 = scmp.le.s32.totalorder 1, %s12
      %p160 = scmp.lt.s32.totalorder %s12, 5
      %p161 = pnand %p159, %p160
      %p162 = pneg %p161
      // Predicated region
      $region29: #{tpu_custom_call.1} parent=5 // pred_check
        _
      $region30: #{tpu_custom_call.1} parent=5 // pred_check_branch
        %164 = sbr.rel (%p161) target = $region32
      $region31: #{tpu_custom_call.1} parent=5 // pred_region
        %s165 = ssub.s32 %s12, 1
        %p166 = pneg %p45
        %p167 = pneg %p42
        %p168 = scmp.lt.s32.totalorder %s21, 1
        %s169 = scalar_select %p168, %s21, 1
        %p170 = scmp.lt.s32.totalorder %s22, 1
        %s171 = scalar_select %p170, %s22, 1
        %s172 = smul.addr %s171, 2
        %s173 = smul.addr %s169, 4
        %s174 = sadd.s32 %s172, %s173
        %s175 = smul.addr %s174, 2
        %s176 = scalar_lea.vmem %s1, %s175
        %p177 = pneg %p73
        %p178 = pneg %p70
        %p179 = pneg %p94
        %p180 = pneg %p91
        %p181 = pneg %p122
        %p182 = pneg %p119
        %s183 = sand.u32 %s109, 1
        %s184 = scalar_lea.sflag [#allocation4], %s183
        %s185 = sand.u32 %s109, 1
        %s186 = smul.addr %s185, 16
        %s187 = scalar_lea.vmem [#allocation3], %s186
        %p188 = scmp.lt.s32.totalorder %s21, 1
        %s189 = scalar_select %p188, %s21, 1
        %p190 = scmp.lt.s32.totalorder %s22, 1
        %s191 = scalar_select %p190, %s22, 1
        %s192 = smul.addr %s191, 2
        %s193 = smul.addr %s189, 4
        %s194 = sadd.s32 %s192, %s193
        %s195 = smul.addr %s194, 2
        %s196 = scalar_lea.vmem %s1, %s195
        %v200 = vlaneseq
        %v201 = vand.u32 %v200, 127
        %vm202 = vcmp.lt.s32.totalorder %v201, 0
        %v203 = vsub.s32 0, %v201
        %v204 = vsel %vm202, %v203, %v201
        %v205 = vshrl.u32 %v204, 4
        %v206 = vand.u32 %v204, 15
        %v207 = vsub.s32 0, %v206
        %v208 = vsel %vm202, %v207, %v206
        %vm209 = vcmp.ne.s32.totalorder %v208, 0
        %vm210 = vcmp.lt.s32.totalorder %v208, 0
        %vm211 = vmand %vm210, %vm209
        %v212 = vadd.s32 %v208, 16
        %v213 = vsel %vm211, %v212, %v208
        %v214 = vld [vmem:[%s196] sm:$0x3]
        %vm215 = vcmp.ge.s32.totalorder %v213, 1
        %v216 = vsel %vm215, 1, 0
        %v217 = vpack.c.b16 %v216, %v216
        %v218 = vunpack.c.l.b16 %v217
        %v219 = vunpack.c.h.b16 %v217
        %v220 = vunpack.c.l.b16 0
        %v221 = vunpack.c.h.b16 0
        %vm222 = vcmp.ne.s32.totalorder %v218, %v220
        %vm223 = vcmp.ne.s32.totalorder %v219, %v221
        %vm224 = vmpackc.low %vm223, %vm222
        %v225 = vsel %vm224, %v214, 0
        %226 = vst [vmem:[#allocation2] sm:$0x3] %v225
        %v227 = vld [vmem:[%s196] sm:$0xf]
        %s229 = scalar_lea.vmem [#allocation1], 1
        %230 = vst [vmem:[%s229] ss:$2 sm:$0xff] %v227
        %v231 = vld.sshfl [vmem:[#allocation1] sm:$0xff pattern:$0x75643120]
        %233 = vrot.lane.b32.xlu0 %v231, 127
        %v234 = vpop.permute.xlu0 %233
        %v235 = vrot.slane %v234, 4
        %vm236 = vcmask 1039360
        %v237 = vsel %vm236, %v234, %v235
        %239 = vst [vmem:[#allocation2] sm:$0xc] %v237
        %v240 = vld [vmem:[%s196] sm:$0xf]
        %vm241 = vcmp.lt.s32.totalorder %v213, 15
        %v242 = vsel %vm241, 1, 0
        %v243 = vpack.c.b16 %v242, %v242
        %v244 = vunpack.c.l.b16 %v243
        %v245 = vunpack.c.h.b16 %v243
        %v246 = vunpack.c.l.b16 0
        %v247 = vunpack.c.h.b16 0
        %vm248 = vcmp.ne.s32.totalorder %v244, %v246
        %vm249 = vcmp.ne.s32.totalorder %v245, %v247
        %vm250 = vmpackc.low %vm249, %vm248
        %v251 = vsel %vm250, 65537, 0
        %252 = vrot.lane.b32.xlu0 %v251, 2
        %v253 = vpop.permute.xlu0 %252
        %v254 = vrot.slane %v253, 6
        %vm255 = vcmask 15360
        %v256 = vsel %vm255, %v254, %v253
        %v257 = vunpack.c.l.b16 %v256
        %v258 = vunpack.c.h.b16 %v256
        %v259 = vunpack.c.l.b16 0
        %v260 = vunpack.c.h.b16 0
        %vm261 = vcmp.ne.s32.totalorder %v257, %v259
        %vm262 = vcmp.ne.s32.totalorder %v258, %v260
        %vm263 = vmpackc.low %vm262, %vm261
        %v264 = vsel %vm263, %v240, 0
        %266 = vst [vmem:[#allocation1] ss:$2 sm:$0xff] %v264
        %v267 = vld.sshfl [vmem:[#allocation1] sm:$0xff pattern:$0x75643120]
        %269 = vrot.lane.b32.xlu0 %v267, 126
        %v270 = vpop.permute.xlu0 %269
        %v271 = vrot.slane %v270, 4
        %vm272 = vcmask 1031168
        %v273 = vsel %vm272, %v270, %v271
        %275 = vst [vmem:[#allocation2 + $0x4] sm:$0x3] %v273
        %v276 = vld [vmem:[%s196] sm:$0xf]
        %v277 = vsel %vm224, 65537, 0
        %278 = vrot.lane.b32.xlu0 %v277, 16
        %v279 = vpop.permute.xlu0 %278
        %v280 = vrot.slane %v279, 6
        %vm281 = vcmask 130048
        %v282 = vsel %vm281, %v280, %v279
        %v283 = vunpack.c.l.b16 %v282
        %v284 = vunpack.c.h.b16 %v282
        %v285 = vunpack.c.l.b16 0
        %v286 = vunpack.c.h.b16 0
        %vm287 = vcmp.ne.s32.totalorder %v283, %v285
        %vm288 = vcmp.ne.s32.totalorder %v284, %v286
        %vm289 = vmpackc.low %vm288, %vm287
        %v290 = vsel %vm289, %v276, 0
        %s292 = scalar_lea.vmem [#allocation1], 1
        %293 = vst [vmem:[%s292] ss:$2 sm:$0xff] %v290
        %v294 = vld.sshfl [vmem:[#allocation1] sm:$0xff pattern:$0x75643120]
        %296 = vrot.lane.b32.xlu0 %v294, 112
        %v297 = vpop.permute.xlu0 %296
        %v298 = vrot.slane %v297, 4
        %vm299 = vcmask 916480
        %v300 = vsel %vm299, %v297, %v298
        %302 = vst [vmem:[#allocation2 + $0x4] sm:$0xc] %v300
        %v303 = vld [vmem:[%s196] sm:$0xf]
        %305 = vst [vmem:[#allocation1] ss:$2 sm:$0xff] %v303
        %v306 = vld.sshfl [vmem:[#allocation1] sm:$0xff pattern:$0x75643120]
        %308 = vrot.lane.b32.xlu0 %v306, 111
        %v309 = vpop.permute.xlu0 %308
        %v310 = vrot.slane %v309, 4
        %vm311 = vcmask 908288
        %v312 = vsel %vm311, %v309, %v310
        %314 = vst [vmem:[#allocation2 + $0x8] sm:$0x3] %v312
        %v315 = vld [vmem:[%s196] sm:$0xf]
        %316 = vrot.lane.b32.xlu0 %v251, 18
        %v317 = vpop.permute.xlu0 %316
        %v318 = vrot.slane %v317, 6
        %vm319 = vcmask 146432
        %v320 = vsel %vm319, %v318, %v317
        %v321 = vunpack.c.l.b16 %v320
        %v322 = vunpack.c.h.b16 %v320
        %v323 = vunpack.c.l.b16 0
        %v324 = vunpack.c.h.b16 0
        %vm325 = vcmp.ne.s32.totalorder %v321, %v323
        %vm326 = vcmp.ne.s32.totalorder %v322, %v324
        %vm327 = vmpackc.low %vm326, %vm325
        %v328 = vsel %vm327, %v315, 0
        %s330 = scalar_lea.vmem [#allocation1], 1
        %331 = vst [vmem:[%s330] ss:$2 sm:$0xff] %v328
        %v332 = vld.sshfl [vmem:[#allocation1] sm:$0xff pattern:$0x75643120]
        %334 = vrot.lane.b32.xlu0 %v332, 110
        %v335 = vpop.permute.xlu0 %334
        %v336 = vrot.slane %v335, 4
        %vm337 = vcmask 900096
        %v338 = vsel %vm337, %v335, %v336
        %340 = vst [vmem:[#allocation2 + $0x8] sm:$0xc] %v338
        %v341 = vld [vmem:[%s196] sm:$0xf]
        %342 = vrot.lane.b32.xlu0 %v277, 32
        %v343 = vpop.permute.xlu0 %342
        %v344 = vrot.slane %v343, 6
        %vm345 = vcmask 261120
        %v346 = vsel %vm345, %v344, %v343
        %v347 = vunpack.c.l.b16 %v346
        %v348 = vunpack.c.h.b16 %v346
        %v349 = vunpack.c.l.b16 0
        %v350 = vunpack.c.h.b16 0
        %vm351 = vcmp.ne.s32.totalorder %v347, %v349
        %vm352 = vcmp.ne.s32.totalorder %v348, %v350
        %vm353 = vmpackc.low %vm352, %vm351
        %v354 = vsel %vm353, %v341, 0
        %356 = vst [vmem:[#allocation1] ss:$2 sm:$0xff] %v354
        %v357 = vld.sshfl [vmem:[#allocation1] sm:$0xff pattern:$0x75643120]
        %359 = vrot.lane.b32.xlu0 %v357, 96
        %v360 = vpop.permute.xlu0 %359
        %v361 = vrot.slane %v360, 4
        %vm362 = vcmask 785408
        %v363 = vsel %vm362, %v360, %v361
        %365 = vst [vmem:[#allocation2 + $0xc] sm:$0x3] %v363
        %v366 = vld [vmem:[%s196] sm:$0xf]
        %s368 = scalar_lea.vmem [#allocation1], 1
        %369 = vst [vmem:[%s368] ss:$2 sm:$0xff] %v366
        %v370 = vld.sshfl [vmem:[#allocation1] sm:$0xff pattern:$0x75643120]
        %372 = vrot.lane.b32.xlu0 %v370, 95
        %v373 = vpop.permute.xlu0 %372
        %v374 = vrot.slane %v373, 4
        %vm375 = vcmask 777216
        %v376 = vsel %vm375, %v373, %v374
        %378 = vst [vmem:[#allocation2 + $0xc] sm:$0xc] %v376
        %v379 = vld [vmem:[%s196] sm:$0xf]
        %380 = vrot.lane.b32.xlu0 %v251, 34
        %v381 = vpop.permute.xlu0 %380
        %v382 = vrot.slane %v381, 6
        %vm383 = vcmask 277504
        %v384 = vsel %vm383, %v382, %v381
        %v385 = vunpack.c.l.b16 %v384
        %v386 = vunpack.c.h.b16 %v384
        %v387 = vunpack.c.l.b16 0
        %v388 = vunpack.c.h.b16 0
        %vm389 = vcmp.ne.s32.totalorder %v385, %v387
        %vm390 = vcmp.ne.s32.totalorder %v386, %v388
        %vm391 = vmpackc.low %vm390, %vm389
        %v392 = vsel %vm391, %v379, 0
        %394 = vst [vmem:[#allocation1] ss:$2 sm:$0xff] %v392
        %v395 = vld.sshfl [vmem:[#allocation1] sm:$0xff pattern:$0x75643120]
        %397 = vrot.lane.b32.xlu0 %v395, 94
        %v398 = vpop.permute.xlu0 %397
        %v399 = vrot.slane %v398, 4
        %vm400 = vcmask 769024
        %v401 = vsel %vm400, %v398, %v399
        %403 = vst [vmem:[#allocation2 + $0x10] sm:$0x3] %v401
        %v404 = vld [vmem:[%s0] sm:$0xf]
        %v405 = vld [vmem:[%s0 + $0x4] sm:$0xf]
        %v406 = vld [vmem:[%s0 + $0x8] sm:$0xf]
        %v407 = vld [vmem:[%s0 + $0xc] sm:$0xf]
        %v408 = vld [vmem:[#allocation2] sm:$0xf]
        %v409 = vld [vmem:[#allocation2 + $0x4] sm:$0xf]
        %v410 = vld [vmem:[#allocation2 + $0x8] sm:$0xf]
        %v411 = vld [vmem:[#allocation2 + $0xc] sm:$0xf]
        %v412 = vld [vmem:[#allocation2 + $0x10] sm:$0x3]
        %v413 = vld [vmem:[%s2] sm:$0xff]
        %v414 = vld [vmem:[%s2 + $0x8] sm:$0xff]
        %v415 = vld [vmem:[%s2 + $0x10] sm:$0xff]
        %v416 = vld [vmem:[%s2 + $0x18] sm:$0xff]
        %418 = vset.pattern.permute.xlu0 0
        %419 = vperm.xlu0 %418, %v413
        %v420 = vpop.permute.xlu0 %419
        %423 = vset.pattern.permute.xlu0 0
        %424 = vperm.xlu0 %423, %v414
        %v425 = vpop.permute.xlu0 %424
        %428 = vset.pattern.permute.xlu0 0
        %429 = vperm.xlu0 %428, %v415
        %v430 = vpop.permute.xlu0 %429
        %433 = vset.pattern.permute.xlu0 0
        %434 = vperm.xlu0 %433, %v416
        %v435 = vpop.permute.xlu0 %434
        %v441 = vunpack.c.l.b16 %v404
        %v442 = vunpack.c.l.b16 %v405
        %v443 = vunpack.c.l.b16 %v406
        %v444 = vunpack.c.l.b16 %v407
        %v445 = vpack.c.b16 %v442, %v441
        %v446 = vpack.c.b16 %v444, %v443
        %v452 = vunpack.c.l.b16 %v408
        %v453 = vunpack.c.l.b16 %v409
        %v454 = vunpack.c.l.b16 %v410
        %v455 = vunpack.c.l.b16 %v411
        %v456 = vunpack.c.l.b16 %v412
        %v457 = vpack.c.b16 %v453, %v452
        %v458 = vpack.c.b16 %v455, %v454
        %v459 = vpack.c.b16 %v456, %v456
        %vm462 = vcmask 293888
        %v464 = vsel %vm462, %v445, 0
        %v467 = vsel %vm462, %v446, 0
        %vm469 = vcmask 1041408
        %v471 = vsel %vm469, %v459, 0
        %473 = vmatpush.bf16.msra.mxu0 0
        %474 = vmatpush.bf16.msra.mxu0 0
        %475 = vmatpush.bf16.msra.mxu0 0
        %476 = vmatpush.bf16.msra.mxu0 0
        %477 = vmatpush.bf16.msra.mxu0 0
        %478 = vmatpush.bf16.msra.mxu0 %v471
        %479 = vmatpush.bf16.msra.mxu0 %v458
        %480 = vmatpush.bf16.msra.mxu0 %v457
        %481 = vmatmul.bf16.gmra.mxu0 %v464
        %v482 = vpop.f32.mrf.mxu0
        %v483 = vadd.f32 %v420, %v482
        %v484 = vpop.f32.mrf.mxu0
        %v485 = vadd.f32 %v425, %v484
        %486 = vmatmul.bf16.gmra.mxu0 %v467
        %v487 = vpop.f32.mrf.mxu0
        %v488 = vadd.f32 %v430, %v487
        %v489 = vpop.f32.mrf.mxu0
        %v490 = vadd.f32 %v435, %v489
        %491 = vdwg.mxu0
        %v492 = vmax.f32 %v483, 0.0
        %v493 = vmax.f32 %v485, 0.0
        %v494 = vmax.f32 %v488, 0.0
        %v495 = vmax.f32 %v490, 0.0
        %v496 = vpack.c.bf16 %v492, %v492
        %v497 = vpack.c.bf16 %v493, %v493
        %v498 = vpack.c.bf16 %v494, %v494
        %v499 = vpack.c.bf16 %v495, %v495
        %500 = vst [vmem:[%s187] sm:$0xf] %v496
        %501 = vst [vmem:[%s187 + $0x4] sm:$0xf] %v497
        %502 = vst [vmem:[%s187 + $0x8] sm:$0xf] %v498
        %503 = vst [vmem:[%s187 + $0xc] sm:$0xf] %v499
        %s504 = sand.u32 %s109, 1
        %s505 = scalar_lea.sflag [#allocation4], %s504
        %s506 = sand.u32 %s109, 1
        %s507 = smul.addr %s506, 16
        %s508 = scalar_lea.vmem [#allocation3], %s507
        // Predicated region
        $region33: #{tpu_custom_call.1} parent=31 // pred_check
          %p509 = pneg %p119
        $region34: #{tpu_custom_call.1} parent=31 // pred_check_branch
          %511 = sbr.rel (%p509) target = $region36
        $region35: #{tpu_custom_call.1} parent=31 // pred_region
          %513 = vsyncadd %s505, 0
          %s514 = smul.addr %s21, 8
          %s515 = sadd.s32 %s22, %s514
          %s516 = smul.addr %s515, 4
          %s517 = scalar_lea.hbm %s3, %s516
          %s518 = sshll.u32 %s508, 4
          %s519 = int_to_ptr.vmem [resolvable:$true] %s518
          %s520 = sshll.u32 %s517, 4
          %s521 = int_to_ptr.hbm [resolvable:$true] %s520
          %526 = dma.vmem_to_hbm [thread:$0]  %s519, 256, %s521, %s505, 64, 128, 4
        $region36: #{tpu_custom_call.1} parent=31 // pred_fallthru
          _
      $region32: #{tpu_custom_call.1} parent=5 // pred_fallthru
        _
      %p527 = scmp.le.s32.totalorder 2, %s12
      // Predicated region
      $region37: #{tpu_custom_call.1} parent=5 // pred_check
        %p528 = pneg %p527
      $region38: #{tpu_custom_call.1} parent=5 // pred_check_branch
        %530 = sbr.rel (%p528) target = $region40
      $region39: #{tpu_custom_call.1} parent=5 // pred_region
        %s531 = ssub.s32 %s12, 2
        // Predicated region
        $region41: #{tpu_custom_call.1} parent=39 // pred_check
          %p532 = pneg %p125
        $region42: #{tpu_custom_call.1} parent=39 // pred_check_branch
          %534 = sbr.rel (%p532) target = $region44
        $region43: #{tpu_custom_call.1} parent=39 // pred_region
          %s535 = sand.u32 %s110, 1
          %s536 = scalar_lea.sflag [#allocation4], %s535
          %s537 = sand.u32 %s110, 1
          %s538 = smul.addr %s537, 16
          %s539 = scalar_lea.vmem [#allocation3], %s538
          %541 = dma.done %s536, 256
        $region44: #{tpu_custom_call.1} parent=39 // pred_fallthru
          _
      $region40: #{tpu_custom_call.1} parent=5 // pred_fallthru
        _
    $region6: #{tpu_custom_call.1} parent=1 // loop_footer
      %s16 = sadd.s32 1, %s12
    $region7: #{tpu_custom_call.1} parent=1 // loop_footer_branch
      %11 = sbr.rel target = $region3
    $region8: #{tpu_custom_call.1} parent=1 // loop_exit
      _
    %542 = vsyncpa [#allocation4], 1
    %s543 = scalar_lea.sflag [#allocation4], 1
    %544 = vsyncpa %s543, 1

</llo_original>
